<compile_context>
chip_gen: v7x
topology: tpu7x:2x2x1
jax: 0.10.0
libtpu: 0.0.40
codegen_flags: <defaults>
</compile_context>

<pallas_src>
import functools

import jax
import jax.numpy as jnp
import numpy as np
from jax import lax
from jax.experimental import pallas as pl
from jax.experimental.pallas import tpu as pltpu

K = 7   # kernel_size (torch module allows 3 or 7; this implements 7)
P = 3   # padding for kernel_size 7


# ---------------------------------------------------------------------------
# Phase 1: channel sum / max reduction over lane-dense flat blocks.
# ---------------------------------------------------------------------------
def _channel_reduce_kernel(x_ref, o_ref):
    """Grid = (N, S_tiles, C_tiles); channel (reduction) axis last.

    x_ref : (1, ct, ts) block of x viewed as (N, C, S); ts is lane-dense.
    o_ref : (1, 2, ts) block of the f32 [channel-sum, channel-max] result.
            Its index_map ignores the c axis, so it stays resident in VMEM and
            serves as the aligned, offset-0 accumulator.
    """
    ct = x_ref.shape[1]
    c_idx = pl.program_id(2)

    # Per-tile sum / max over the ct channels of this block (f32 accumulation).
    x0 = x_ref[0, 0:1].astype(jnp.float32)           # (1, ts)
    if ct <= 32:
        s, m = x0, x0
        for c in range(1, ct):
            xc = x_ref[0, c:c + 1].astype(jnp.float32)
            s = s + xc
            m = jnp.maximum(m, xc)
    else:
        def c_body(c, carry):
            s, m = carry
            xc = x_ref[0, pl.ds(c, 1)].astype(jnp.float32)
            return s + xc, jnp.maximum(m, xc)
        s, m = lax.fori_loop(1, ct, c_body, (x0, x0))

    @pl.when(c_idx == 0)
    def _init():
        o_ref[0, 0:1] = s
        o_ref[0, 1:2] = m

    @pl.when(c_idx > 0)
    def _accumulate():
        o_ref[0, 0:1] += s
        o_ref[0, 1:2] = jnp.maximum(o_ref[0, 1:2], m)


# ---------------------------------------------------------------------------
# Phase 2: 7x7x7 conv + sigmoid on the 2-channel reduced volume.
# ---------------------------------------------------------------------------
def _conv_sigmoid_kernel(w_ref, r_ref, o_ref, pad_ref, shift_ref, *, d_tile):
    """Grid = (N,): one full output volume per step.

    w_ref     : (2*K*K*K,) f32 conv weights in SMEM (channel 0 pre-scaled 1/C).
    r_ref     : (1, 2, D, H, W) f32 block of [channel-sum, channel-max].
    o_ref     : (1, 1, D, H, W) output block (x dtype).
    pad_ref   : (2, D+2P, H+2P, W+2P) f32 scratch, zero-padded conv input.
    shift_ref : (2, K, D+2P, H+2P, W) f32 scratch; shift_ref[ch, kw] holds
                pad_ref[ch, :, :, kw:kw+W] so the tap loop needs no per-tap
                lane rotation.
    """
    _, _, D, H, W = r_ref.shape
    Hp, Wp = H + 2 * P, W + 2 * P

    # ---- zero-padded volume, built once per volume: halo memset + interior ----
    z_d = jnp.zeros((2, P, Hp, Wp), jnp.float32)
    z_h = jnp.zeros((2, D, P, Wp), jnp.float32)
    z_w = jnp.zeros((2, D, H, P), jnp.float32)
    pad_ref[:, :P, :, :] = z_d                    # d-halo (front)
    pad_ref[:, P + D:, :, :] = z_d                # d-halo (back)
    pad_ref[:, P:P + D, :P, :] = z_h              # h-halo (top)
    pad_ref[:, P:P + D, P + H:, :] = z_h          # h-halo (bottom)
    pad_ref[:, P:P + D, P:P + H, :P] = z_w        # w-halo (left)
    pad_ref[:, P:P + D, P:P + H, P + W:] = z_w    # w-halo (right)
    pad_ref[0, P:P + D, P:P + H, P:P + W] = r_ref[0, 0]
    pad_ref[1, P:P + D, P:P + H, P:P + W] = r_ref[0, 1]

    # ---- hoist the kw lane shifts out of the tap loop (14 volume passes) ----
    for ch in range(2):
        for kw in range(K):
            shift_ref[ch, kw] = pad_ref[ch, :, :, kw:kw + W]

    # ---- 7x7x7 conv: lane-aligned slab loads + SMEM-scalar FMA + sigmoid ----
    n_d = D // d_tile
    for di in range(n_d):                         # static; d-tiled accumulator
        d0 = di * d_tile

        def kd_body(kd, acc):
            for ch in range(2):
                base = ch * (K * K * K) + kd * (K * K)
                for kh in range(K):
                    for kw in range(K):
                        wv = w_ref[base + kh * K + kw]           # SMEM scalar
                        slab = shift_ref[ch, kw,
                                         pl.ds(d0 + kd, d_tile),
                                         kh:kh + H, :]           # lane-aligned
                        acc = acc + slab * wv
            return acc

        acc = lax.fori_loop(0, K, kd_body,
                            jnp.zeros((d_tile, H, W), jnp.float32))
        o_ref[0, 0, d0:d0 + d_tile] = jax.nn.sigmoid(acc).astype(o_ref.dtype)


# ---------------------------------------------------------------------------
# Host-side tiling / budgeting helpers.
# ---------------------------------------------------------------------------
def _divisors(n):
    out, i = set(), 1
    while i * i <= n:
        if n % i == 0:
            out.add(i)
            out.add(n // i)
        i += 1
    return sorted(out)


def _padded_bytes(shape, itemsize):
    """VMEM bytes of a buffer after (8, 128) tiling of its two minor dims."""
    if len(shape) == 1:
        return -(-(shape[0] * itemsize) // 512) * 512
    lead = 1
    for d in shape[:-2]:
        lead *= d
    sub = -(-shape[-2] // 8) * 8
    lane = -(-shape[-1] // 128) * 128
    return lead * sub * lane * itemsize


def _pick_reduce_tiles(C, S, itemsize, target_bytes):
    """(ct, ts) for the reduction kernel's (1, ct, ts) input block.

    Block-shape rule: the two minor dims must be divisible by (8, 128) or be
    the full array extent, so candidates are restricted accordingly.
    """
    def cost(ct, ts):
        return _padded_bytes((1, ct, ts), itemsize)

    c_cands = [d for d in _divisors(C) if d % 8 == 0 or d == C]
    s_cands = [d for d in _divisors(S) if d % 128 == 0 or d == S]

    if cost(min(c_cands), S) <= target_bytes:
        # Keep the whole flattened spatial extent; grow the channel tile.
        ts = S
        ct = max(c for c in c_cands if cost(c, S) <= target_bytes)
    else:
        # Spatial extent alone is large: smallest channel tile, tile space.
        ct = min(c_cands)
        fits = [t for t in s_cands if cost(ct, t) <= target_bytes]
        ts = max(fits) if fits else min(s_cands)
    return ct, ts


def _largest_divisor_leq(n, cap):
    return max([d for d in _divisors(n) if d <= cap] or [1])


def _vmem_budget_bytes():
    """~75% of this generation's physical VMEM (v7x: 64 MiB; v5e/v6e: 128 MiB)."""
    cap = None
    try:
        cap = getattr(pltpu.get_tpu_info(), "vmem_capacity_bytes", None)
    except Exception:
        cap = None
    if not cap:
        cap = 64 * 1024 * 1024            # conservative (v7x-sized) fallback
    return int(0.75 * int(cap))


# ---------------------------------------------------------------------------
# Public entry point.
# ---------------------------------------------------------------------------
def spatial_attention(x, weight, *, block_target_bytes=None):
    """sigmoid(conv3d(cat([mean_c(x), max_c(x)], 1), weight, padding=3)).

    x      : (N, C, D, H, W)
    weight : (2, K, K, K)  Conv3d(2, 1, 7, bias=False) weight, out-ch squeezed.
    Returns (N, 1, D, H, W) in x.dtype.
    """
    N, C, D, H, W = x.shape
    assert weight.shape == (2, K, K, K)
    S = D * H * W
    itemsize = x.dtype.itemsize

    vmem_budget = _vmem_budget_bytes()
    if block_target_bytes is None:
        # ~0.5-2 MiB per input block: >=85% of HBM roofline in the measured
        # tile-size sweep, without hogging VMEM needed for pipelining.
        block_target_bytes = int(min(2 << 20, max(512 << 10, vmem_budget // 16)))

    ct, ts = _pick_reduce_tiles(C, S, itemsize, block_target_bytes)
    n_c, n_s = C // ct, S // ts

    # Fold 1/C of the channel mean into weight channel 0 -> kernels use a SUM.
    scale = jnp.array([1.0 / C, 1.0], jnp.float32).reshape(2, 1, 1, 1)
    w_flat = (weight.astype(jnp.float32) * scale).reshape(-1)

    # ---------------- phase 1: lane-dense channel sum / max ----------------
    x_flat = x.reshape(N, C, S)
    red_est = (2 * _padded_bytes((1, ct, ts), itemsize)
               + 2 * _padded_bytes((1, 2, ts), 4)
               + (1 << 20))
    red = pl.pallas_call(
        _channel_reduce_kernel,
        out_shape=jax.ShapeDtypeStruct((N, 2, S), jnp.float32),
        grid_spec=pltpu.PrefetchScalarGridSpec(
            num_scalar_prefetch=0,
            grid=(N, n_s, n_c),
            in_specs=[pl.BlockSpec((1, ct, ts), lambda n, si, c: (n, c, si))],
            out_specs=pl.BlockSpec((1, 2, ts), lambda n, si, c: (n, 0, si)),
        ),
        compiler_params=pltpu.CompilerParams(
            dimension_semantics=("parallel", "parallel", "arbitrary"),
            vmem_limit_bytes=int(min(max(red_est, 16 << 20), vmem_budget)),
        ),
    )(x_flat)

    # ---------------- phase 2: 7x7x7 conv + sigmoid per volume -------------
    red5 = red.reshape(N, 2, D, H, W)
    Dp, Hp, Wp = D + 2 * P, H + 2 * P, W + 2 * P

    # Keep the vreg-resident conv accumulator under ~64 KiB (half the 256 KiB
    # vreg file, leaving room for the slab operands).
    d_tile = _largest_divisor_leq(D, max(1, (64 << 10) // max(1, H * W * 4)))

    conv_est = (2 * _padded_bytes((1, 2, D, H, W), 4)
                + 2 * _padded_bytes((1, 1, D, H, W), itemsize)
                + _padded_bytes((2, Dp, Hp, Wp), 4)
                + _padded_bytes((2, K, Dp, Hp, W), 4)
                + (2 << 20))

    out = pl.pallas_call(
        functools.partial(_conv_sigmoid_kernel, d_tile=d_tile),
        out_shape=jax.ShapeDtypeStruct((N, 1, D, H, W), x.dtype),
        grid_spec=pltpu.PrefetchScalarGridSpec(
            num_scalar_prefetch=0,
            grid=(N,),
            in_specs=[
                pl.BlockSpec(memory_space=pltpu.MemorySpace.SMEM),   # weights
                pl.BlockSpec((1, 2, D, H, W), lambda n: (n, 0, 0, 0, 0)),
            ],
            out_specs=pl.BlockSpec((1, 1, D, H, W), lambda n: (n, 0, 0, 0, 0)),
            scratch_shapes=[
                pltpu.VMEM((2, Dp, Hp, Wp), jnp.float32),
                pltpu.VMEM((2, K, Dp, Hp, W), jnp.float32),
            ],
        ),
        compiler_params=pltpu.CompilerParams(
            dimension_semantics=("parallel",),
            vmem_limit_bytes=int(min(max(conv_est, 16 << 20), vmem_budget)),
        ),
    )(w_flat, red5)
    return out


def spatial_attention_reference(x, weight):
    """Pure-JAX reference mirroring the torch forward, for validation."""
    avg = jnp.mean(x, axis=1, keepdims=True)
    mx = jnp.max(x, axis=1, keepdims=True)
    feat = jnp.concatenate([avg, mx], axis=1)            # (N, 2, D, H, W)
    w = weight[None]                                     # (1, 2, K, K, K) OIDHW
    y = jax.lax.conv_general_dilated(
        feat, w,
        window_strides=(1, 1, 1),
        padding=[(P, P)] * 3,
        dimension_numbers=("NCDHW", "OIDHW", "NCDHW"),
    )
    return jax.nn.sigmoid(y)


if __name__ == "__main__":
    key = jax.random.PRNGKey(0)
    kx, kw_key = jax.random.split(key)

    # Small shapes consistent with a 5-D Conv3d input: (N, C, D, H, W).
    N, C, D, H, W = 2, 16, 8, 8, 8
    x = jax.random.normal(kx, (N, C, D, H, W), dtype=jnp.float32)

    # Conv3d weight (out=1, in=2, 7, 7, 7), bias=False; out-channel squeezed.
    weight = jax.random.normal(kw_key, (2, K, K, K), dtype=jnp.float32) * 0.05

    ref = spatial_attention_reference(x, weight)

    # Default (budget-derived) tiling: whole (C, S) volume per block here.
    out = jax.block_until_ready(spatial_attention(x, weight))
    np.testing.assert_allclose(np.asarray(out), np.asarray(ref),
                               rtol=1e-4, atol=3e-5)

    # Tiny block target -> exercises the multi-step channel accumulation and
    # spatial-tiling paths of the reduction kernel (ct=8, ts=256, grid 2x2x2).
    out2 = jax.block_until_ready(
        spatial_attention(x, weight, block_target_bytes=8 * 1024))
    np.testing.assert_allclose(np.asarray(out2), np.asarray(ref),
                               rtol=1e-4, atol=3e-5)

    assert out.shape == (N, 1, D, H, W)
    print("KERNEL_OK")
</pallas_src>

<mosaic_0001>
module attributes {stable_mosaic.version = 11 : i64} {
  func.func @_channel_reduce_kernel(%arg0: i32, %arg1: i32, %arg2: i32, %arg3: memref<1x16x512xf32, #tpu.memory_space<vmem>>, %arg4: memref<1x2x512xf32, #tpu.memory_space<vmem>>) attributes {dimension_semantics = [#tpu.dimension_semantics<parallel>, #tpu.dimension_semantics<parallel>, #tpu.dimension_semantics<arbitrary>], iteration_bounds = array<i64: 2, 1, 1>, scalar_prefetch = 0 : i64, scratch_operands = 0 : i64, tpu.core_type = #tpu.core_type<tc>, window_params = [{transform_indices = @transform_0, window_bounds = array<i64: 1, 16, 512>}, {transform_indices = @transform_1, window_bounds = array<i64: 1, 2, 512>}]} {
    %c0 = arith.constant 0 : index
    %c0_0 = arith.constant 0 : index
    %c0_1 = arith.constant 0 : index
    %0 = vector.load %arg3[%c0, %c0_0, %c0_1] : memref<1x16x512xf32, #tpu.memory_space<vmem>>, vector<1x1x512xf32>
    %1 = vector.shape_cast %0 : vector<1x1x512xf32> to vector<1x512xf32>
    %c0_2 = arith.constant 0 : index
    %c1 = arith.constant 1 : index
    %c0_3 = arith.constant 0 : index
    %2 = vector.load %arg3[%c0_2, %c1, %c0_3] : memref<1x16x512xf32, #tpu.memory_space<vmem>>, vector<1x1x512xf32>
    %3 = vector.shape_cast %2 : vector<1x1x512xf32> to vector<1x512xf32>
    %4 = arith.addf %1, %3 : vector<1x512xf32>
    %5 = arith.maximumf %1, %3 : vector<1x512xf32>
    %c0_4 = arith.constant 0 : index
    %c2 = arith.constant 2 : index
    %c0_5 = arith.constant 0 : index
    %6 = vector.load %arg3[%c0_4, %c2, %c0_5] : memref<1x16x512xf32, #tpu.memory_space<vmem>>, vector<1x1x512xf32>
    %7 = vector.shape_cast %6 : vector<1x1x512xf32> to vector<1x512xf32>
    %8 = arith.addf %4, %7 : vector<1x512xf32>
    %9 = arith.maximumf %5, %7 : vector<1x512xf32>
    %c0_6 = arith.constant 0 : index
    %c3 = arith.constant 3 : index
    %c0_7 = arith.constant 0 : index
    %10 = vector.load %arg3[%c0_6, %c3, %c0_7] : memref<1x16x512xf32, #tpu.memory_space<vmem>>, vector<1x1x512xf32>
    %11 = vector.shape_cast %10 : vector<1x1x512xf32> to vector<1x512xf32>
    %12 = arith.addf %8, %11 : vector<1x512xf32>
    %13 = arith.maximumf %9, %11 : vector<1x512xf32>
    %c0_8 = arith.constant 0 : index
    %c4 = arith.constant 4 : index
    %c0_9 = arith.constant 0 : index
    %14 = vector.load %arg3[%c0_8, %c4, %c0_9] : memref<1x16x512xf32, #tpu.memory_space<vmem>>, vector<1x1x512xf32>
    %15 = vector.shape_cast %14 : vector<1x1x512xf32> to vector<1x512xf32>
    %16 = arith.addf %12, %15 : vector<1x512xf32>
    %17 = arith.maximumf %13, %15 : vector<1x512xf32>
    %c0_10 = arith.constant 0 : index
    %c5 = arith.constant 5 : index
    %c0_11 = arith.constant 0 : index
    %18 = vector.load %arg3[%c0_10, %c5, %c0_11] : memref<1x16x512xf32, #tpu.memory_space<vmem>>, vector<1x1x512xf32>
    %19 = vector.shape_cast %18 : vector<1x1x512xf32> to vector<1x512xf32>
    %20 = arith.addf %16, %19 : vector<1x512xf32>
    %21 = arith.maximumf %17, %19 : vector<1x512xf32>
    %c0_12 = arith.constant 0 : index
    %c6 = arith.constant 6 : index
    %c0_13 = arith.constant 0 : index
    %22 = vector.load %arg3[%c0_12, %c6, %c0_13] : memref<1x16x512xf32, #tpu.memory_space<vmem>>, vector<1x1x512xf32>
    %23 = vector.shape_cast %22 : vector<1x1x512xf32> to vector<1x512xf32>
    %24 = arith.addf %20, %23 : vector<1x512xf32>
    %25 = arith.maximumf %21, %23 : vector<1x512xf32>
    %c0_14 = arith.constant 0 : index
    %c7 = arith.constant 7 : index
    %c0_15 = arith.constant 0 : index
    %26 = vector.load %arg3[%c0_14, %c7, %c0_15] : memref<1x16x512xf32, #tpu.memory_space<vmem>>, vector<1x1x512xf32>
    %27 = vector.shape_cast %26 : vector<1x1x512xf32> to vector<1x512xf32>
    %28 = arith.addf %24, %27 : vector<1x512xf32>
    %29 = arith.maximumf %25, %27 : vector<1x512xf32>
    %c0_16 = arith.constant 0 : index
    %c8 = arith.constant 8 : index
    %c0_17 = arith.constant 0 : index
    %30 = vector.load %arg3[%c0_16, %c8, %c0_17] : memref<1x16x512xf32, #tpu.memory_space<vmem>>, vector<1x1x512xf32>
    %31 = vector.shape_cast %30 : vector<1x1x512xf32> to vector<1x512xf32>
    %32 = arith.addf %28, %31 : vector<1x512xf32>
    %33 = arith.maximumf %29, %31 : vector<1x512xf32>
    %c0_18 = arith.constant 0 : index
    %c9 = arith.constant 9 : index
    %c0_19 = arith.constant 0 : index
    %34 = vector.load %arg3[%c0_18, %c9, %c0_19] : memref<1x16x512xf32, #tpu.memory_space<vmem>>, vector<1x1x512xf32>
    %35 = vector.shape_cast %34 : vector<1x1x512xf32> to vector<1x512xf32>
    %36 = arith.addf %32, %35 : vector<1x512xf32>
    %37 = arith.maximumf %33, %35 : vector<1x512xf32>
    %c0_20 = arith.constant 0 : index
    %c10 = arith.constant 10 : index
    %c0_21 = arith.constant 0 : index
    %38 = vector.load %arg3[%c0_20, %c10, %c0_21] : memref<1x16x512xf32, #tpu.memory_space<vmem>>, vector<1x1x512xf32>
    %39 = vector.shape_cast %38 : vector<1x1x512xf32> to vector<1x512xf32>
    %40 = arith.addf %36, %39 : vector<1x512xf32>
    %41 = arith.maximumf %37, %39 : vector<1x512xf32>
    %c0_22 = arith.constant 0 : index
    %c11 = arith.constant 11 : index
    %c0_23 = arith.constant 0 : index
    %42 = vector.load %arg3[%c0_22, %c11, %c0_23] : memref<1x16x512xf32, #tpu.memory_space<vmem>>, vector<1x1x512xf32>
    %43 = vector.shape_cast %42 : vector<1x1x512xf32> to vector<1x512xf32>
    %44 = arith.addf %40, %43 : vector<1x512xf32>
    %45 = arith.maximumf %41, %43 : vector<1x512xf32>
    %c0_24 = arith.constant 0 : index
    %c12 = arith.constant 12 : index
    %c0_25 = arith.constant 0 : index
    %46 = vector.load %arg3[%c0_24, %c12, %c0_25] : memref<1x16x512xf32, #tpu.memory_space<vmem>>, vector<1x1x512xf32>
    %47 = vector.shape_cast %46 : vector<1x1x512xf32> to vector<1x512xf32>
    %48 = arith.addf %44, %47 : vector<1x512xf32>
    %49 = arith.maximumf %45, %47 : vector<1x512xf32>
    %c0_26 = arith.constant 0 : index
    %c13 = arith.constant 13 : index
    %c0_27 = arith.constant 0 : index
    %50 = vector.load %arg3[%c0_26, %c13, %c0_27] : memref<1x16x512xf32, #tpu.memory_space<vmem>>, vector<1x1x512xf32>
    %51 = vector.shape_cast %50 : vector<1x1x512xf32> to vector<1x512xf32>
    %52 = arith.addf %48, %51 : vector<1x512xf32>
    %53 = arith.maximumf %49, %51 : vector<1x512xf32>
    %c0_28 = arith.constant 0 : index
    %c14 = arith.constant 14 : index
    %c0_29 = arith.constant 0 : index
    %54 = vector.load %arg3[%c0_28, %c14, %c0_29] : memref<1x16x512xf32, #tpu.memory_space<vmem>>, vector<1x1x512xf32>
    %55 = vector.shape_cast %54 : vector<1x1x512xf32> to vector<1x512xf32>
    %56 = arith.addf %52, %55 : vector<1x512xf32>
    %57 = arith.maximumf %53, %55 : vector<1x512xf32>
    %c0_30 = arith.constant 0 : index
    %c15 = arith.constant 15 : index
    %c0_31 = arith.constant 0 : index
    %58 = vector.load %arg3[%c0_30, %c15, %c0_31] : memref<1x16x512xf32, #tpu.memory_space<vmem>>, vector<1x1x512xf32>
    %59 = vector.shape_cast %58 : vector<1x1x512xf32> to vector<1x512xf32>
    %60 = arith.addf %56, %59 : vector<1x512xf32>
    %61 = arith.maximumf %57, %59 : vector<1x512xf32>
    %c0_i32 = arith.constant 0 : i32
    %62 = arith.cmpi eq, %arg2, %c0_i32 : i32
    %63 = arith.extui %62 : i1 to i32
    %c0_i32_32 = arith.constant 0 : i32
    %64 = arith.cmpi ne, %63, %c0_i32_32 : i32
    scf.if %64 {
      %c0_35 = arith.constant 0 : index
      %c0_36 = arith.constant 0 : index
      %c0_37 = arith.constant 0 : index
      %68 = vector.load %arg4[%c0_35, %c0_36, %c0_37] : memref<1x2x512xf32, #tpu.memory_space<vmem>>, vector<1x1x512xf32>
      %69 = vector.shape_cast %68 : vector<1x1x512xf32> to vector<1x512xf32>
      %70 = vector.shape_cast %60 : vector<1x512xf32> to vector<1x1x512xf32>
      tpu.vector_store %arg4[%c0_35, %c0_36, %c0_37], %70 {strides = array<i32>} : memref<1x2x512xf32, #tpu.memory_space<vmem>>, vector<1x1x512xf32>,
      %c0_38 = arith.constant 0 : index
      %c1_39 = arith.constant 1 : index
      %c0_40 = arith.constant 0 : index
      %71 = vector.load %arg4[%c0_38, %c1_39, %c0_40] : memref<1x2x512xf32, #tpu.memory_space<vmem>>, vector<1x1x512xf32>
      %72 = vector.shape_cast %71 : vector<1x1x512xf32> to vector<1x512xf32>
      %73 = vector.shape_cast %61 : vector<1x512xf32> to vector<1x1x512xf32>
      tpu.vector_store %arg4[%c0_38, %c1_39, %c0_40], %73 {strides = array<i32>} : memref<1x2x512xf32, #tpu.memory_space<vmem>>, vector<1x1x512xf32>,
    } else {
    }
    %c0_i32_33 = arith.constant 0 : i32
    %65 = arith.cmpi sgt, %arg2, %c0_i32_33 : i32
    %66 = arith.extui %65 : i1 to i32
    %c0_i32_34 = arith.constant 0 : i32
    %67 = arith.cmpi ne, %66, %c0_i32_34 : i32
    scf.if %67 {
      %c0_35 = arith.constant 0 : index
      %c0_36 = arith.constant 0 : index
      %c0_37 = arith.constant 0 : index
      %68 = vector.load %arg4[%c0_35, %c0_36, %c0_37] : memref<1x2x512xf32, #tpu.memory_space<vmem>>, vector<1x1x512xf32>
      %69 = vector.shape_cast %68 : vector<1x1x512xf32> to vector<1x512xf32>
      %70 = arith.addf %69, %60 : vector<1x512xf32>
      %c0_38 = arith.constant 0 : index
      %c0_39 = arith.constant 0 : index
      %c0_40 = arith.constant 0 : index
      %71 = vector.load %arg4[%c0_38, %c0_39, %c0_40] : memref<1x2x512xf32, #tpu.memory_space<vmem>>, vector<1x1x512xf32>
      %72 = vector.shape_cast %71 : vector<1x1x512xf32> to vector<1x512xf32>
      %73 = vector.shape_cast %70 : vector<1x512xf32> to vector<1x1x512xf32>
      tpu.vector_store %arg4[%c0_38, %c0_39, %c0_40], %73 {strides = array<i32>} : memref<1x2x512xf32, #tpu.memory_space<vmem>>, vector<1x1x512xf32>,
      %c0_41 = arith.constant 0 : index
      %c1_42 = arith.constant 1 : index
      %c0_43 = arith.constant 0 : index
      %74 = vector.load %arg4[%c0_41, %c1_42, %c0_43] : memref<1x2x512xf32, #tpu.memory_space<vmem>>, vector<1x1x512xf32>
      %75 = vector.shape_cast %74 : vector<1x1x512xf32> to vector<1x512xf32>
      %76 = arith.maximumf %75, %61 : vector<1x512xf32>
      %c0_44 = arith.constant 0 : index
      %c1_45 = arith.constant 1 : index
      %c0_46 = arith.constant 0 : index
      %77 = vector.load %arg4[%c0_44, %c1_45, %c0_46] : memref<1x2x512xf32, #tpu.memory_space<vmem>>, vector<1x1x512xf32>
      %78 = vector.shape_cast %77 : vector<1x1x512xf32> to vector<1x512xf32>
      %79 = vector.shape_cast %76 : vector<1x512xf32> to vector<1x1x512xf32>
      tpu.vector_store %arg4[%c0_44, %c1_45, %c0_46], %79 {strides = array<i32>} : memref<1x2x512xf32, #tpu.memory_space<vmem>>, vector<1x1x512xf32>,
    } else {
    }
    return
  }
  func.func @transform_0(%arg0: i32, %arg1: i32, %arg2: i32) -> (i32, i32, i32) {
    %c0_i32 = arith.constant 0 : i32
    return %arg0, %arg2, %arg1 : i32, i32, i32
  }
  func.func @transform_1(%arg0: i32, %arg1: i32, %arg2: i32) -> (i32, i32, i32) {
    %c0_i32 = arith.constant 0 : i32
    %c0_i32_0 = arith.constant 0 : i32
    return %arg0, %c0_i32, %arg1 : i32, i32, i32
  }
}

</mosaic_0001>

<llo_original>
// kernel: tpu_custom_call.1
$region0: #{tpu_custom_call.1}
  #allocation0 [shape = 'u32[]', space=smem, size = 0x4, offset = 0x4, fixed_abs, tag = 'smem constant byte address 0x4 - core index']
  #allocation1 [shape = 'u32[144,128]{1,0:T(1,128)}', space=vmem, size = 0x12000, scoped, tag = 'internal scratch']
  %s0 = inlined_call_operand.hbm [shape: f32[2,16,512], index: 0, kind: input, shape index: {}]
  %s1 = inlined_call_operand.hbm [shape: f32[2,2,512], index: 1, kind: output, shape index: {}]
  %s2 = sld [smem:[#allocation0]]
  $region49: #{tpu_custom_call.1} parent=0
    _
  %s4 = ssub.s32 1, %s2
  %s5 = scalar_select 0, %s4, %s2
  $region1: #{tpu_custom_call.1} parent=0
    #allocation2 [shape = 'u8[65536]{0}', space=vmem, size = 0x10000, scoped, tag = 'input window, operand 0']
    #allocation3 [shape = 's32[2]{0}', space=sflag, size = 0x8, scoped, tag = 'scoped memory for tpu_custom_call.1']
    #allocation4 [shape = 's32[2]{0}', space=sflag, size = 0x8, scoped, tag = 'scoped memory for tpu_custom_call.1']
    #allocation5 [shape = 'u8[8192]{0}', space=vmem, size = 0x2000, scoped, tag = 'output window, operand 0']
    %6 = vsyncpa [#allocation3], 0
    %s7 = scalar_lea.sflag [#allocation3], 1
    %8 = vsyncpa %s7, 0
    %9 = vsyncpa [#allocation4], 0
    %s10 = scalar_lea.sflag [#allocation4], 1
    %11 = vsyncpa %s10, 0
    loop: start=0, step=1, limit=4
    $region2: #{tpu_custom_call.1} parent=1 // loop_pre_header
      _
    $region3: #{tpu_custom_call.1} parent=1 // loop_header
      %s13 = sphi 0, %s17
      %p14 = scmp.ge.s32.totalorder %s13, 4
      %s20 = sphi 0, %s39
      %s21 = sphi 0, %s35
      %s22 = sphi 0, %s31
      %s23 = sphi 0, %s20
      %s24 = sphi 0, %s21
      %s25 = sphi 0, %s22
      %s26 = sphi 0, %s23
      %s27 = sphi 0, %s24
      %s28 = sphi 0, %s25
      %s46 = sphi 0, %s48
      %s49 = sphi 0, %s46
      %s50 = sphi 0, %s49
      %s66 = sphi 0, %s50
      %s74 = sphi 0, %s76
      %s77 = sphi 0, %s74
      %s78 = sphi 0, %s77
      %s94 = sphi 0, %s78
    $region4: #{tpu_custom_call.1} parent=1 // loop_header_branch
      %16 = sbr.rel (%p14) target = $region8
    $region5: #{tpu_custom_call.1} parent=1 // loop_body
      %s18 = ssub.s32 %s13, 1
      %s19 = ssub.s32 %s13, 2
      %s29 = sadd.s32 1, %s22
      %p30 = scmp.ge.s32.totalorder %s29, 1
      %s31 = scalar_select %p30, 0, %s29
      %s32 = sadd.s32 1, %s21
      %s33 = scalar_select %p30, %s32, %s21
      %p34 = scmp.ge.s32.totalorder %s33, 1
      %s35 = scalar_select %p34, 0, %s33
      %s36 = sadd.s32 1, %s20
      %s37 = scalar_select %p34, %s36, %s20
      %p38 = scmp.ge.s32.totalorder %s37, 2
      %s39 = scalar_select %p38, 0, %s37
      %s40 = ssub.s32 %s20, %s39
      %s41 = ssub.s32 %s22, %s31
      %s42 = sor.u32 %s40, %s41
      %s43 = ssub.s32 %s21, %s35
      %s44 = sor.u32 %s42, %s43
      %p45 = scmp.eq.s32.totalorder %s44, 0
      %s47 = sadd.s32 %s46, 1
      %s48 = scalar_select %p45, %s46, %s47
      %p51 = pneg %p45
      %p52 = scmp.eq.s32.totalorder %s13, 1
      %p53 = por %p51, %p52
      %p54 = scmp.ne.s32.totalorder %s46, %s49
      %p55 = scmp.eq.s32.totalorder %s13, 0
      %p56 = por %p54, %p55
      %p57 = scmp.ne.s32.totalorder %s46, %s49
      %p58 = scmp.eq.s32.totalorder %s18, 1
      %p59 = por %p57, %p58
      %p60 = scmp.ne.s32.totalorder %s49, %s50
      %p61 = scmp.eq.s32.totalorder %s18, 0
      %p62 = por %p60, %p61
      %p63 = scmp.ne.s32.totalorder %s49, %s50
      %p64 = scmp.eq.s32.totalorder %s19, 1
      %p65 = por %p63, %p64
      %p67 = scmp.ne.s32.totalorder %s50, %s66
      %p68 = scmp.eq.s32.totalorder %s19, 0
      %p69 = por %p67, %p68
      %s70 = ssub.s32 %s20, %s39
      %s71 = ssub.s32 %s21, %s35
      %s72 = sor.u32 %s70, %s71
      %p73 = scmp.eq.s32.totalorder %s72, 0
      %s75 = sadd.s32 %s74, 1
      %s76 = scalar_select %p73, %s74, %s75
      %p79 = pneg %p73
      %p80 = scmp.eq.s32.totalorder %s13, 1
      %p81 = por %p79, %p80
      %p82 = scmp.ne.s32.totalorder %s74, %s77
      %p83 = scmp.eq.s32.totalorder %s13, 0
      %p84 = por %p82, %p83
      %p85 = scmp.ne.s32.totalorder %s74, %s77
      %p86 = scmp.eq.s32.totalorder %s18, 1
      %p87 = por %p85, %p86
      %p88 = scmp.ne.s32.totalorder %s77, %s78
      %p89 = scmp.eq.s32.totalorder %s18, 0
      %p90 = por %p88, %p89
      %p91 = scmp.ne.s32.totalorder %s77, %s78
      %p92 = scmp.eq.s32.totalorder %s19, 1
      %p93 = por %p91, %p92
      %p95 = scmp.ne.s32.totalorder %s78, %s94
      %p96 = scmp.eq.s32.totalorder %s19, 0
      %p97 = por %p95, %p96
      %p98 = scmp.le.s32.totalorder 1, %s13
      %p99 = scmp.lt.s32.totalorder %s13, 3
      %p100 = pnand %p98, %p99
      %p101 = pneg %p100
      // Predicated region
      $region9: #{tpu_custom_call.1} parent=5 // pred_check
        _
      $region10: #{tpu_custom_call.1} parent=5 // pred_check_branch
        %103 = sbr.rel (%p100) target = $region12
      $region11: #{tpu_custom_call.1} parent=5 // pred_region
        %s104 = ssub.s32 %s13, 1
      $region12: #{tpu_custom_call.1} parent=5 // pred_fallthru
        _
      %p105 = scmp.lt.s32.totalorder %s13, 2
      // Predicated region
      $region13: #{tpu_custom_call.1} parent=5 // pred_check
        %p106 = pneg %p105
      $region14: #{tpu_custom_call.1} parent=5 // pred_check_branch
        %108 = sbr.rel (%p106) target = $region16
      $region15: #{tpu_custom_call.1} parent=5 // pred_region
        // Predicated region
        $region17: #{tpu_custom_call.1} parent=15 // pred_check
          %p109 = pneg %p56
        $region18: #{tpu_custom_call.1} parent=15 // pred_check_branch
          %111 = sbr.rel (%p109) target = $region20
        $region19: #{tpu_custom_call.1} parent=15 // pred_region
          %s112 = sand.u32 %s46, 1
          %s113 = scalar_lea.sflag [#allocation3], %s112
          %s114 = sand.u32 %s46, 1
          %s115 = smul.addr %s114, 64
          %s116 = scalar_lea.vmem [#allocation2], %s115
          %s117 = smul.u32 2, %s22
          %s118 = smul.u32 4, %s21
          %s120 = ssub.s32 1024, 1024
          %121 = vsyncadd %s113, %s120
          %s122 = smul.addr %s117, 4
          %s123 = sadd.s32 %s118, %s122
          %s124 = smul.addr %s20, 8
          %s125 = sadd.s32 %s123, %s124
          %s126 = smul.addr %s125, 128
          %s127 = scalar_lea.hbm %s0, %s126
          %s128 = sshll.u32 %s116, 4
          %s129 = int_to_ptr.vmem [resolvable:$true] %s128
          %134 = dma.hbm_to_vmem [thread:$0]  %s127, 1024, %s129, %s113, 512, 512, 32
        $region20: #{tpu_custom_call.1} parent=15 // pred_fallthru
          _
      $region16: #{tpu_custom_call.1} parent=5 // pred_fallthru
        _
      %p135 = scmp.le.s32.totalorder 1, %s13
      %p136 = scmp.lt.s32.totalorder %s13, 3
      %p137 = pnand %p135, %p136
      %p138 = pneg %p137
      // Predicated region
      $region21: #{tpu_custom_call.1} parent=5 // pred_check
        _
      $region22: #{tpu_custom_call.1} parent=5 // pred_check_branch
        %140 = sbr.rel (%p137) target = $region24
      $region23: #{tpu_custom_call.1} parent=5 // pred_region
        %s141 = ssub.s32 %s13, 1
        %s142 = sand.u32 %s49, 1
        %s143 = scalar_lea.sflag [#allocation3], %s142
        %s144 = sand.u32 %s49, 1
        %s145 = smul.addr %s144, 64
        %s146 = scalar_lea.vmem [#allocation2], %s145
        // Predicated region
        $region25: #{tpu_custom_call.1} parent=23 // pred_check
          %p147 = pneg %p62
        $region26: #{tpu_custom_call.1} parent=23 // pred_check_branch
          %149 = sbr.rel (%p147) target = $region28
        $region27: #{tpu_custom_call.1} parent=23 // pred_region
          %150 = dma.done %s143, 1024
        $region28: #{tpu_custom_call.1} parent=23 // pred_fallthru
          _
        %s151 = sand.u32 %s49, 1
        %s152 = scalar_lea.sflag [#allocation3], %s151
        %s153 = sand.u32 %s49, 1
        %s154 = smul.addr %s153, 64
        %s155 = scalar_lea.vmem [#allocation2], %s154
        %p156 = pneg %p62
        %p157 = pneg %p59
        %p158 = pneg %p90
        %p159 = pneg %p87
        %s160 = sand.u32 %s77, 1
        %s161 = scalar_lea.sflag [#allocation4], %s160
        %s162 = sand.u32 %s77, 1
        %s163 = smul.addr %s162, 8
        %s164 = scalar_lea.vmem [#allocation5], %s163
        %s165 = smul.u32 2, %s25
        %s166 = smul.u32 4, %s24
        %s167 = smul.u32 4, %s24
        %v168 = vld [vmem:[%s146] ss:$8 sm:$0xf]
        %s169 = scalar_lea.vmem %s146, 1 [#allocation2]
        %v170 = vld [vmem:[%s169] ss:$8 sm:$0xf]
        %v171 = vadd.f32 %v168, %v170
        %v172 = vmax.f32 %v168, %v170
        %s173 = scalar_lea.vmem %s146, 2 [#allocation2]
        %v174 = vld [vmem:[%s173] ss:$8 sm:$0xf]
        %v175 = vadd.f32 %v171, %v174
        %v176 = vmax.f32 %v172, %v174
        %s177 = scalar_lea.vmem %s146, 3 [#allocation2]
        %v178 = vld [vmem:[%s177] ss:$8 sm:$0xf]
        %v179 = vadd.f32 %v175, %v178
        %v180 = vmax.f32 %v176, %v178
        %s181 = scalar_lea.vmem %s146, 4 [#allocation2]
        %v182 = vld [vmem:[%s181] ss:$8 sm:$0xf]
        %v183 = vadd.f32 %v179, %v182
        %v184 = vmax.f32 %v180, %v182
        %s185 = scalar_lea.vmem %s146, 5 [#allocation2]
        %v186 = vld [vmem:[%s185] ss:$8 sm:$0xf]
        %v187 = vadd.f32 %v183, %v186
        %v188 = vmax.f32 %v184, %v186
        %s189 = scalar_lea.vmem %s146, 6 [#allocation2]
        %v190 = vld [vmem:[%s189] ss:$8 sm:$0xf]
        %v191 = vadd.f32 %v187, %v190
        %v192 = vmax.f32 %v188, %v190
        %s193 = scalar_lea.vmem %s146, 7 [#allocation2]
        %v194 = vld [vmem:[%s193] ss:$8 sm:$0xf]
        %v195 = vadd.f32 %v191, %v194
        %v196 = vmax.f32 %v192, %v194
        %s197 = scalar_lea.vmem %s146, 32 [#allocation2]
        %v198 = vld [vmem:[%s197] ss:$8 sm:$0xf]
        %v199 = vadd.f32 %v195, %v198
        %v200 = vmax.f32 %v196, %v198
        %s201 = scalar_lea.vmem %s146, 33 [#allocation2]
        %v202 = vld [vmem:[%s201] ss:$8 sm:$0xf]
        %v203 = vadd.f32 %v199, %v202
        %v204 = vmax.f32 %v200, %v202
        %s205 = scalar_lea.vmem %s146, 34 [#allocation2]
        %v206 = vld [vmem:[%s205] ss:$8 sm:$0xf]
        %v207 = vadd.f32 %v203, %v206
        %v208 = vmax.f32 %v204, %v206
        %s209 = scalar_lea.vmem %s146, 35 [#allocation2]
        %v210 = vld [vmem:[%s209] ss:$8 sm:$0xf]
        %v211 = vadd.f32 %v207, %v210
        %v212 = vmax.f32 %v208, %v210
        %s213 = scalar_lea.vmem %s146, 36 [#allocation2]
        %v214 = vld [vmem:[%s213] ss:$8 sm:$0xf]
        %v215 = vadd.f32 %v211, %v214
        %v216 = vmax.f32 %v212, %v214
        %s217 = scalar_lea.vmem %s146, 37 [#allocation2]
        %v218 = vld [vmem:[%s217] ss:$8 sm:$0xf]
        %v219 = vadd.f32 %v215, %v218
        %v220 = vmax.f32 %v216, %v218
        %s221 = scalar_lea.vmem %s146, 38 [#allocation2]
        %v222 = vld [vmem:[%s221] ss:$8 sm:$0xf]
        %v223 = vadd.f32 %v219, %v222
        %v224 = vmax.f32 %v220, %v222
        %s225 = scalar_lea.vmem %s146, 39 [#allocation2]
        %v226 = vld [vmem:[%s225] ss:$8 sm:$0xf]
        %v227 = vadd.f32 %v223, %v226
        %v228 = vmax.f32 %v224, %v226
        %p229 = scmp.eq.s32.totalorder %s25, 0
        // Predicated region
        $region29: #{tpu_custom_call.1} parent=23 // pred_check
          %p230 = pneg %p229
        $region30: #{tpu_custom_call.1} parent=23 // pred_check_branch
          %232 = sbr.rel (%p230) target = $region32
        $region31: #{tpu_custom_call.1} parent=23 // pred_region
          %v233 = vlaneseq
          %vm234 = vcmp.ge.s32.totalorder %v233, 0
          %vm235 = vcmp.lt.s32.totalorder %v233, 512
          %vm236 = vmand %vm234, %vm235
          %237 = vst.msk [vmem:[%s164] ss:$2 sm:$0xf] %vm236, %v227
          %s238 = scalar_lea.vmem %s164, 1 [#allocation5]
          %239 = vst.msk [vmem:[%s238] ss:$2 sm:$0xf] %vm236, %v228
        $region32: #{tpu_custom_call.1} parent=23 // pred_fallthru
          _
        %p240 = scmp.gt.s32.totalorder %s25, 0
        // Predicated region
        $region33: #{tpu_custom_call.1} parent=23 // pred_check
          %p241 = pneg %p240
        $region34: #{tpu_custom_call.1} parent=23 // pred_check_branch
          %243 = sbr.rel (%p241) target = $region36
        $region35: #{tpu_custom_call.1} parent=23 // pred_region
          %v244 = vld [vmem:[%s164] ss:$2 sm:$0xf]
          %v245 = vadd.f32 %v244, %v227
          %v246 = vlaneseq
          %vm247 = vcmp.ge.s32.totalorder %v246, 0
          %vm248 = vcmp.lt.s32.totalorder %v246, 512
          %vm249 = vmand %vm247, %vm248
          %250 = vst.msk [vmem:[%s164] ss:$2 sm:$0xf] %vm249, %v245
          %s251 = scalar_lea.vmem %s164, 1 [#allocation5]
          %v252 = vld [vmem:[%s251] ss:$2 sm:$0xf]
          %v253 = vmax.f32 %v252, %v228
          %254 = vst.msk [vmem:[%s251] ss:$2 sm:$0xf] %vm249, %v253
        $region36: #{tpu_custom_call.1} parent=23 // pred_fallthru
          _
        %s255 = sand.u32 %s77, 1
        %s256 = scalar_lea.sflag [#allocation4], %s255
        %s257 = sand.u32 %s77, 1
        %s258 = smul.addr %s257, 8
        %s259 = scalar_lea.vmem [#allocation5], %s258
        // Predicated region
        $region37: #{tpu_custom_call.1} parent=23 // pred_check
          %p260 = pneg %p87
        $region38: #{tpu_custom_call.1} parent=23 // pred_check_branch
          %262 = sbr.rel (%p260) target = $region40
        $region39: #{tpu_custom_call.1} parent=23 // pred_region
          %s263 = smul.u32 4, %s24
          %s265 = ssub.s32 128, 128
          %266 = vsyncadd %s256, %s265
          %s267 = smul.addr %s23, 4
          %s268 = sadd.s32 %s263, %s267
          %s269 = smul.addr %s268, 32
          %s270 = scalar_lea.hbm %s1, %s269
          %s272 = sshll.u32 %s259, 4
          %s273 = int_to_ptr.vmem [resolvable:$true] %s272
          %275 = dma.vmem_to_hbm [thread:$0]  %s273, 128, %s270, %s256
        $region40: #{tpu_custom_call.1} parent=23 // pred_fallthru
          _
      $region24: #{tpu_custom_call.1} parent=5 // pred_fallthru
        _
      %p276 = scmp.le.s32.totalorder 2, %s13
      // Predicated region
      $region41: #{tpu_custom_call.1} parent=5 // pred_check
        %p277 = pneg %p276
      $region42: #{tpu_custom_call.1} parent=5 // pred_check_branch
        %279 = sbr.rel (%p277) target = $region44
      $region43: #{tpu_custom_call.1} parent=5 // pred_region
        %s280 = ssub.s32 %s13, 2
        // Predicated region
        $region45: #{tpu_custom_call.1} parent=43 // pred_check
          %p281 = pneg %p93
        $region46: #{tpu_custom_call.1} parent=43 // pred_check_branch
          %283 = sbr.rel (%p281) target = $region48
        $region47: #{tpu_custom_call.1} parent=43 // pred_region
          %s284 = sand.u32 %s78, 1
          %s285 = scalar_lea.sflag [#allocation4], %s284
          %s286 = sand.u32 %s78, 1
          %s287 = smul.addr %s286, 8
          %s288 = scalar_lea.vmem [#allocation5], %s287
          %289 = dma.done %s285, 128
        $region48: #{tpu_custom_call.1} parent=43 // pred_fallthru
          _
      $region44: #{tpu_custom_call.1} parent=5 // pred_fallthru
        _
    $region6: #{tpu_custom_call.1} parent=1 // loop_footer
      %s17 = sadd.s32 1, %s13
    $region7: #{tpu_custom_call.1} parent=1 // loop_footer_branch
      %12 = sbr.rel target = $region3
    $region8: #{tpu_custom_call.1} parent=1 // loop_exit
      _
    %290 = vsyncpa [#allocation3], 1
    %s291 = scalar_lea.sflag [#allocation3], 1
    %292 = vsyncpa %s291, 1
    %293 = vsyncpa [#allocation4], 1
    %s294 = scalar_lea.sflag [#allocation4], 1
    %295 = vsyncpa %s294, 1

</llo_original>
